<compile_context>
chip_gen: v5e
topology: v5e:2x2
jax: 0.10.0
libtpu: 0.0.40
codegen_flags: <defaults>
</compile_context>

<pallas_src>
import math
import functools

import jax
import jax.numpy as jnp
from jax import lax
from jax.experimental import pallas as pl
from jax.experimental.pallas import tpu as pltpu

# --- "args" from the reference code (synthetic, deterministic) ---
SPARSITY = 0.5          # args.sparsity: fraction of weights kept
NEGATIVE_SLOPE = 0.01   # args.negative_slope


def _calculate_gain_leaky_relu(negative_slope):
    # torch.nn.init.calculate_gain('leaky_relu', ns)
    return math.sqrt(2.0 / (1.0 + negative_slope ** 2))


def get_subnet(scores_abs, k):
    """GetSubnet.forward: keep top-k fraction (by value) as 1.0, rest 0.0.

    NOTE: full argsort; ties broken by index order (matches the PyTorch
    sort-based reference up to tie-breaking). Kept as plain-JAX glue.
    """
    flat = scores_abs.reshape(-1)
    j = int((1 - k) * flat.size)
    idx = jnp.argsort(flat)  # ascending
    out = jnp.zeros_like(flat)
    out = out.at[idx[j:]].set(1.0)
    return out.reshape(scores_abs.shape)


def _round_up(v, m):
    return ((v + m - 1) // m) * m


# ---------------- Pallas kernel ----------------
def wn_linear_kernel(x_ref, w_ref, b_ref, o_ref, acc_ref, *, negative_slope):
    # x_ref: (tb, tk), w_ref: (tn, tk), b_ref: (1, tn), o_ref: (tb, tn)
    k = pl.program_id(2)

    @pl.when(k == 0)
    def _():
        acc_ref[...] = jnp.zeros_like(acc_ref)

    # Contract the shared IN axis directly: (tb, tk) x (tn, tk) -> (tb, tn).
    # Pure MXU; no materialized transpose of the weight tile.
    acc_ref[...] += lax.dot_general(
        x_ref[...], w_ref[...],
        dimension_numbers=(((1,), (1,)), ((), ())),
        preferred_element_type=jnp.float32)

    @pl.when(k == pl.num_programs(2) - 1)
    def _():
        out = acc_ref[...] + b_ref[...]  # (1, tn) broadcasts over (tb, tn)
        out = jnp.where(out >= 0, out, jnp.float32(negative_slope) * out)
        o_ref[...] = out.astype(o_ref.dtype)


def weight_norm_linear(x, weight, mask, bias=None, *,
                       sparsity=SPARSITY, negative_slope=NEGATIVE_SLOPE,
                       tb=None, tn=None, tk=None):
    """x: (B, IN); weight, mask: (OUT, IN); optional bias: (OUT,). Returns (B, OUT)."""
    B, IN = x.shape
    OUT, IN_w = weight.shape
    assert IN == IN_w

    # Fold the binary mask and the 1/sparsity scale into the weight ONCE
    # (plain XLA op) -> the kernel streams a single OUT x IN array.
    w_eff = (weight * mask) * jnp.float32(1.0 / sparsity)

    # --- tile sizes: lane-dense (128-multiples on IN/OUT, 8-multiple on batch) ---
    if tb is None:
        tb = min(256, _round_up(B, 8))
    if tn is None:
        tn = min(256, _round_up(OUT, 128))
    if tk is None:
        tk = min(512, _round_up(IN, 128))
    assert tb % 8 == 0 and tn % 128 == 0 and tk % 128 == 0

    Bp = _round_up(B, tb)
    OUTp = _round_up(OUT, tn)
    INp = _round_up(IN, tk)

    # Zero-pad: extra IN columns contribute 0 to the dot; extra batch rows /
    # OUT columns are sliced away after the call.
    xp = jnp.zeros((Bp, INp), x.dtype).at[:B, :IN].set(x)
    wp = jnp.zeros((OUTp, INp), w_eff.dtype).at[:OUT, :IN].set(w_eff)
    if bias is None:
        bp = jnp.zeros((1, OUTp), jnp.float32)
    else:
        bp = jnp.zeros((1, OUTp), jnp.float32).at[0, :OUT].set(bias.astype(jnp.float32))

    grid = (Bp // tb, OUTp // tn, INp // tk)

    out_p = pl.pallas_call(
        functools.partial(wn_linear_kernel, negative_slope=negative_slope),
        out_shape=jax.ShapeDtypeStruct((Bp, OUTp), x.dtype),
        grid_spec=pltpu.PrefetchScalarGridSpec(
            num_scalar_prefetch=0,
            grid=grid,
            in_specs=[
                pl.BlockSpec((tb, tk), lambda i, j, k: (i, k)),   # x tile
                pl.BlockSpec((tn, tk), lambda i, j, k: (j, k)),   # folded weight tile
                pl.BlockSpec((1, tn), lambda i, j, k: (0, j)),    # bias tile
            ],
            out_specs=pl.BlockSpec((tb, tn), lambda i, j, k: (i, j)),
            scratch_shapes=[pltpu.VMEM((tb, tn), jnp.float32)],
        ),
        compiler_params=pltpu.CompilerParams(
            dimension_semantics=("parallel", "parallel", "arbitrary")),
    )(xp, wp, bp)

    return out_p[:B, :OUT]


# ---------------- Parameter init (matches _WeightNormLayer.initialize) ----------------
def init_params(key, in_features, out_features):
    gain = _calculate_gain_leaky_relu(NEGATIVE_SLOPE)
    next_ks = 1
    fan = out_features * next_ks
    bound = gain / math.sqrt(fan)
    k_w, k_s = jax.random.split(key)
    weight = bound * jax.random.normal(k_w, (out_features, in_features), jnp.float32)
    score = bound * jax.random.normal(k_s, (out_features, in_features), jnp.float32)
    # bias=False by default in the module (bias=True would init to zeros anyway)
    mask = get_subnet(jnp.abs(score), SPARSITY)
    return weight, score, mask


def _reference(x, weight, mask, bias=None):
    w_eff = weight * mask / SPARSITY
    out = x @ w_eff.T
    if bias is not None:
        out = out + bias
    return jnp.where(out >= 0, out, NEGATIVE_SLOPE * out)


if __name__ == "__main__":
    key = jax.random.PRNGKey(0)

    # --- case 1: multi-tile grid (exercises K-accumulation + OUT/batch padding) ---
    B, IN, OUT = 16, 256, 192
    k_x, k_p, key = jax.random.split(key, 3)
    x = jax.random.normal(k_x, (B, IN), jnp.float32)
    weight, score, mask = init_params(k_p, IN, OUT)
    out = weight_norm_linear(x, weight, mask, tb=8, tn=128, tk=128)
    out = jax.block_until_ready(out)
    ref = _reference(x, weight, mask)
    assert out.shape == (B, OUT)
    assert jnp.allclose(out, ref, atol=1e-4, rtol=1e-4)

    # --- case 2: tiny layer (original toy shape; exercises 128-padding of IN/OUT) ---
    B2, IN2, OUT2 = 8, 32, 32
    k_x2, k_p2 = jax.random.split(key)
    x2 = jax.random.normal(k_x2, (B2, IN2), jnp.float32)
    weight2, score2, mask2 = init_params(k_p2, IN2, OUT2)
    out2 = weight_norm_linear(x2, weight2, mask2)
    out2 = jax.block_until_ready(out2)
    ref2 = _reference(x2, weight2, mask2)
    assert out2.shape == (B2, OUT2)
    assert jnp.allclose(out2, ref2, atol=1e-5, rtol=1e-5)

    print("KERNEL_OK")
</pallas_src>

<mosaic_0001>
module attributes {stable_mosaic.version = 11 : i64} {
  func.func @wn_linear_kernel(%arg0: i32, %arg1: i32, %arg2: i32, %arg3: memref<8x128xf32, #tpu.memory_space<vmem>>, %arg4: memref<128x128xf32, #tpu.memory_space<vmem>>, %arg5: memref<1x128xf32, #tpu.memory_space<vmem>>, %arg6: memref<8x128xf32, #tpu.memory_space<vmem>>, %arg7: memref<8x128xf32, #tpu.memory_space<vmem>>) attributes {dimension_semantics = [#tpu.dimension_semantics<parallel>, #tpu.dimension_semantics<parallel>, #tpu.dimension_semantics<arbitrary>], iteration_bounds = array<i64: 2, 2, 2>, scalar_prefetch = 0 : i64, scratch_operands = 1 : i64, tpu.core_type = #tpu.core_type<tc>, window_params = [{transform_indices = @transform_0, window_bounds = array<i64: 8, 128>}, {transform_indices = @transform_1, window_bounds = array<i64: 128, 128>}, {transform_indices = @transform_2, window_bounds = array<i64: 1, 128>}, {transform_indices = @transform_3, window_bounds = array<i64: 8, 128>}]} {
    %c0_i32 = arith.constant 0 : i32
    %0 = arith.cmpi eq, %arg2, %c0_i32 : i32
    %1 = arith.extui %0 : i1 to i32
    %c0_i32_0 = arith.constant 0 : i32
    %2 = arith.cmpi ne, %1, %c0_i32_0 : i32
    scf.if %2 {
      %cst_9 = arith.constant 0.000000e+00 : f32
      %12 = vector.broadcast %cst_9 : f32 to vector<8x128xf32>
      %c0_10 = arith.constant 0 : index
      %c0_11 = arith.constant 0 : index
      %13 = vector.load %arg7[%c0_10, %c0_11] : memref<8x128xf32, #tpu.memory_space<vmem>>, vector<8x128xf32>
      tpu.vector_store %arg7[%c0_10, %c0_11], %12 {strides = array<i32>} : memref<8x128xf32, #tpu.memory_space<vmem>>, vector<8x128xf32>,
    } else {
    }
    %c0 = arith.constant 0 : index
    %c0_1 = arith.constant 0 : index
    %3 = vector.load %arg7[%c0, %c0_1] : memref<8x128xf32, #tpu.memory_space<vmem>>, vector<8x128xf32>
    %c0_2 = arith.constant 0 : index
    %c0_3 = arith.constant 0 : index
    %4 = vector.load %arg3[%c0_2, %c0_3] : memref<8x128xf32, #tpu.memory_space<vmem>>, vector<8x128xf32>
    %c0_4 = arith.constant 0 : index
    %c0_5 = arith.constant 0 : index
    %5 = vector.load %arg4[%c0_4, %c0_5] : memref<128x128xf32, #tpu.memory_space<vmem>>, vector<128x128xf32>
    %cst = arith.constant dense<0.000000e+00> : vector<8x128xf32>
    %6 = tpu.matmul %4, %5, %cst {dimension_numbers = #tpu.dot_dimension_numbers<[1], [1], [0], [0], [0, 0, 1, 0], [], []>} : vector<8x128xf32>, vector<128x128xf32>, vector<8x128xf32> -> vector<8x128xf32>
    %7 = arith.addf %3, %6 : vector<8x128xf32>
    %c0_6 = arith.constant 0 : index
    %c0_7 = arith.constant 0 : index
    %8 = vector.load %arg7[%c0_6, %c0_7] : memref<8x128xf32, #tpu.memory_space<vmem>>, vector<8x128xf32>
    tpu.vector_store %arg7[%c0_6, %c0_7], %7 {strides = array<i32>} : memref<8x128xf32, #tpu.memory_space<vmem>>, vector<8x128xf32>,
    %c1_i32 = arith.constant 1 : i32
    %9 = arith.cmpi eq, %arg2, %c1_i32 : i32
    %10 = arith.extui %9 : i1 to i32
    %c0_i32_8 = arith.constant 0 : i32
    %11 = arith.cmpi ne, %10, %c0_i32_8 : i32
    scf.if %11 {
      %c0_9 = arith.constant 0 : index
      %c0_10 = arith.constant 0 : index
      %12 = vector.load %arg7[%c0_9, %c0_10] : memref<8x128xf32, #tpu.memory_space<vmem>>, vector<8x128xf32>
      %c0_11 = arith.constant 0 : index
      %c0_12 = arith.constant 0 : index
      %13 = vector.load %arg5[%c0_11, %c0_12] : memref<1x128xf32, #tpu.memory_space<vmem>>, vector<1x128xf32>
      %14 = vector.broadcast %13 : vector<1x128xf32> to vector<8x128xf32>
      %15 = arith.addf %12, %14 : vector<8x128xf32>
      %cst_13 = arith.constant 0.000000e+00 : f32
      %16 = vector.broadcast %cst_13 : f32 to vector<8x128xf32>
      %17 = arith.cmpf oge, %15, %16 : vector<8x128xf32>
      %cst_14 = arith.constant 0.00999999977 : f32
      %18 = vector.broadcast %cst_14 : f32 to vector<8x128xf32>
      %19 = arith.mulf %18, %15 : vector<8x128xf32>
      %20 = arith.select %17, %15, %19 : vector<8x128xi1>, vector<8x128xf32>
      %c0_15 = arith.constant 0 : index
      %c0_16 = arith.constant 0 : index
      %21 = vector.load %arg6[%c0_15, %c0_16] : memref<8x128xf32, #tpu.memory_space<vmem>>, vector<8x128xf32>
      tpu.vector_store %arg6[%c0_15, %c0_16], %20 {strides = array<i32>} : memref<8x128xf32, #tpu.memory_space<vmem>>, vector<8x128xf32>,
    } else {
    }
    return
  }
  func.func @transform_0(%arg0: i32, %arg1: i32, %arg2: i32) -> (i32, i32) {
    %c0_i32 = arith.constant 0 : i32
    return %arg0, %arg2 : i32, i32
  }
  func.func @transform_1(%arg0: i32, %arg1: i32, %arg2: i32) -> (i32, i32) {
    %c0_i32 = arith.constant 0 : i32
    return %arg1, %arg2 : i32, i32
  }
  func.func @transform_2(%arg0: i32, %arg1: i32, %arg2: i32) -> (i32, i32) {
    %c0_i32 = arith.constant 0 : i32
    %c0_i32_0 = arith.constant 0 : i32
    return %c0_i32, %arg1 : i32, i32
  }
  func.func @transform_3(%arg0: i32, %arg1: i32, %arg2: i32) -> (i32, i32) {
    %c0_i32 = arith.constant 0 : i32
    return %arg0, %arg1 : i32, i32
  }
}

</mosaic_0001>

<llo_original>
// kernel: tpu_custom_call.1
$region0: #{tpu_custom_call.1}
  #allocation0 [shape = 'u32[]', space=smem, size = 0x4, offset = 0x4, fixed_abs, tag = 'smem constant byte address 0x4 - core index']
  #allocation1 [shape = 'u32[72,128]{1,0:T(1,128)}', space=vmem, size = 0x9000, scoped, tag = 'internal scratch']
  #allocation2 [shape = 'f32[8,128]{1,0:T(8,128)}', space=vmem, size = 0x1000, scoped, tag = 'scratch operand']
  %s0 = inlined_call_operand.hbm [shape: f32[16,256], index: 0, kind: input, shape index: {}]
  %s1 = inlined_call_operand.hbm [shape: f32[256,256], index: 1, kind: input, shape index: {}]
  %s2 = inlined_call_operand.hbm [shape: f32[1,256], index: 2, kind: input, shape index: {}]
  %s3 = inlined_call_operand.hbm [shape: f32[16,256], index: 3, kind: output, shape index: {}]
  %s4 = sld [smem:[#allocation0]]
  $region65: #{tpu_custom_call.1} parent=0
    _
  %s6 = ssub.s32 1, %s4
  %s7 = scalar_select 0, %s6, %s4
  $region1: #{tpu_custom_call.1} parent=0
    #allocation3 [shape = 'u8[8192]{0}', space=vmem, size = 0x2000, scoped, tag = 'input window, operand 0']
    #allocation4 [shape = 's32[2]{0}', space=sflag, size = 0x8, scoped, tag = 'scoped memory for tpu_custom_call.1']
    #allocation5 [shape = 's32[2]{0}', space=sflag, size = 0x8, scoped, tag = 'scoped memory for tpu_custom_call.1']
    #allocation6 [shape = 'u8[131072]{0}', space=vmem, size = 0x20000, scoped, tag = 'input window, operand 1']
    #allocation7 [shape = 's32[2]{0}', space=sflag, size = 0x8, scoped, tag = 'scoped memory for tpu_custom_call.1']
    #allocation8 [shape = 'u8[1024]{0}', space=vmem, size = 0x400, scoped, tag = 'input window, operand 2']
    #allocation9 [shape = 'u8[8192]{0}', space=vmem, size = 0x2000, scoped, tag = 'output window, operand 0']
    %8 = vsyncpa [#allocation4], 0
    %s9 = scalar_lea.sflag [#allocation4], 1
    %10 = vsyncpa %s9, 0
    %11 = vsyncpa [#allocation7], 0
    %s12 = scalar_lea.sflag [#allocation7], 1
    %13 = vsyncpa %s12, 0
    %14 = vsyncpa [#allocation5], 0
    %s15 = scalar_lea.sflag [#allocation5], 1
    %16 = vsyncpa %s15, 0
    loop: start=0, step=1, limit=10
    $region2: #{tpu_custom_call.1} parent=1 // loop_pre_header
      _
    $region3: #{tpu_custom_call.1} parent=1 // loop_header
      %s18 = sphi 0, %s22
      %p19 = scmp.ge.s32.totalorder %s18, 10
      %s25 = sphi 0, %s44
      %s26 = sphi 0, %s40
      %s27 = sphi 0, %s36
      %s28 = sphi 0, %s25
      %s29 = sphi 0, %s26
      %s30 = sphi 0, %s27
      %s31 = sphi 0, %s28
      %s32 = sphi 0, %s29
      %s33 = sphi 0, %s30
      %s49 = sphi 0, %s51
      %s52 = sphi 0, %s49
      %s53 = sphi 0, %s52
      %s69 = sphi 0, %s53
      %s77 = sphi 0, %s79
      %s80 = sphi 0, %s77
      %s81 = sphi 0, %s80
      %s97 = sphi 0, %s81
      %s103 = sphi 0, %s105
      %s106 = sphi 0, %s103
      %s107 = sphi 0, %s106
      %s123 = sphi 0, %s107
      %s131 = sphi 0, %s133
      %s134 = sphi 0, %s131
      %s135 = sphi 0, %s134
      %s151 = sphi 0, %s135
    $region4: #{tpu_custom_call.1} parent=1 // loop_header_branch
      %21 = sbr.rel (%p19) target = $region8
    $region5: #{tpu_custom_call.1} parent=1 // loop_body
      %s23 = ssub.s32 %s18, 1
      %s24 = ssub.s32 %s18, 2
      %s34 = sadd.s32 1, %s27
      %p35 = scmp.ge.s32.totalorder %s34, 2
      %s36 = scalar_select %p35, 0, %s34
      %s37 = sadd.s32 1, %s26
      %s38 = scalar_select %p35, %s37, %s26
      %p39 = scmp.ge.s32.totalorder %s38, 2
      %s40 = scalar_select %p39, 0, %s38
      %s41 = sadd.s32 1, %s25
      %s42 = scalar_select %p39, %s41, %s25
      %p43 = scmp.ge.s32.totalorder %s42, 2
      %s44 = scalar_select %p43, 0, %s42
      %s45 = ssub.s32 %s25, %s44
      %s46 = ssub.s32 %s27, %s36
      %s47 = sor.u32 %s45, %s46
      %p48 = scmp.eq.s32.totalorder %s47, 0
      %s50 = sadd.s32 %s49, 1
      %s51 = scalar_select %p48, %s49, %s50
      %p54 = pneg %p48
      %p55 = scmp.eq.s32.totalorder %s18, 7
      %p56 = por %p54, %p55
      %p57 = scmp.ne.s32.totalorder %s49, %s52
      %p58 = scmp.eq.s32.totalorder %s18, 0
      %p59 = por %p57, %p58
      %p60 = scmp.ne.s32.totalorder %s49, %s52
      %p61 = scmp.eq.s32.totalorder %s23, 7
      %p62 = por %p60, %p61
      %p63 = scmp.ne.s32.totalorder %s52, %s53
      %p64 = scmp.eq.s32.totalorder %s23, 0
      %p65 = por %p63, %p64
      %p66 = scmp.ne.s32.totalorder %s52, %s53
      %p67 = scmp.eq.s32.totalorder %s24, 7
      %p68 = por %p66, %p67
      %p70 = scmp.ne.s32.totalorder %s53, %s69
      %p71 = scmp.eq.s32.totalorder %s24, 0
      %p72 = por %p70, %p71
      %s73 = ssub.s32 %s26, %s40
      %s74 = ssub.s32 %s27, %s36
      %s75 = sor.u32 %s73, %s74
      %p76 = scmp.eq.s32.totalorder %s75, 0
      %s78 = sadd.s32 %s77, 1
      %s79 = scalar_select %p76, %s77, %s78
      %p82 = pneg %p76
      %p83 = scmp.eq.s32.totalorder %s18, 7
      %p84 = por %p82, %p83
      %p85 = scmp.ne.s32.totalorder %s77, %s80
      %p86 = scmp.eq.s32.totalorder %s18, 0
      %p87 = por %p85, %p86
      %p88 = scmp.ne.s32.totalorder %s77, %s80
      %p89 = scmp.eq.s32.totalorder %s23, 7
      %p90 = por %p88, %p89
      %p91 = scmp.ne.s32.totalorder %s80, %s81
      %p92 = scmp.eq.s32.totalorder %s23, 0
      %p93 = por %p91, %p92
      %p94 = scmp.ne.s32.totalorder %s80, %s81
      %p95 = scmp.eq.s32.totalorder %s24, 7
      %p96 = por %p94, %p95
      %p98 = scmp.ne.s32.totalorder %s81, %s97
      %p99 = scmp.eq.s32.totalorder %s24, 0
      %p100 = por %p98, %p99
      %s101 = ssub.s32 %s26, %s40
      %p102 = scmp.eq.s32.totalorder %s101, 0
      %s104 = sadd.s32 %s103, 1
      %s105 = scalar_select %p102, %s103, %s104
      %p108 = pneg %p102
      %p109 = scmp.eq.s32.totalorder %s18, 7
      %p110 = por %p108, %p109
      %p111 = scmp.ne.s32.totalorder %s103, %s106
      %p112 = scmp.eq.s32.totalorder %s18, 0
      %p113 = por %p111, %p112
      %p114 = scmp.ne.s32.totalorder %s103, %s106
      %p115 = scmp.eq.s32.totalorder %s23, 7
      %p116 = por %p114, %p115
      %p117 = scmp.ne.s32.totalorder %s106, %s107
      %p118 = scmp.eq.s32.totalorder %s23, 0
      %p119 = por %p117, %p118
      %p120 = scmp.ne.s32.totalorder %s106, %s107
      %p121 = scmp.eq.s32.totalorder %s24, 7
      %p122 = por %p120, %p121
      %p124 = scmp.ne.s32.totalorder %s107, %s123
      %p125 = scmp.eq.s32.totalorder %s24, 0
      %p126 = por %p124, %p125
      %s127 = ssub.s32 %s25, %s44
      %s128 = ssub.s32 %s26, %s40
      %s129 = sor.u32 %s127, %s128
      %p130 = scmp.eq.s32.totalorder %s129, 0
      %s132 = sadd.s32 %s131, 1
      %s133 = scalar_select %p130, %s131, %s132
      %p136 = pneg %p130
      %p137 = scmp.eq.s32.totalorder %s18, 7
      %p138 = por %p136, %p137
      %p139 = scmp.ne.s32.totalorder %s131, %s134
      %p140 = scmp.eq.s32.totalorder %s18, 0
      %p141 = por %p139, %p140
      %p142 = scmp.ne.s32.totalorder %s131, %s134
      %p143 = scmp.eq.s32.totalorder %s23, 7
      %p144 = por %p142, %p143
      %p145 = scmp.ne.s32.totalorder %s134, %s135
      %p146 = scmp.eq.s32.totalorder %s23, 0
      %p147 = por %p145, %p146
      %p148 = scmp.ne.s32.totalorder %s134, %s135
      %p149 = scmp.eq.s32.totalorder %s24, 7
      %p150 = por %p148, %p149
      %p152 = scmp.ne.s32.totalorder %s135, %s151
      %p153 = scmp.eq.s32.totalorder %s24, 0
      %p154 = por %p152, %p153
      %p155 = scmp.le.s32.totalorder 1, %s18
      %p156 = scmp.lt.s32.totalorder %s18, 9
      %p157 = pnand %p155, %p156
      %p158 = pneg %p157
      // Predicated region
      $region9: #{tpu_custom_call.1} parent=5 // pred_check
        _
      $region10: #{tpu_custom_call.1} parent=5 // pred_check_branch
        %160 = sbr.rel (%p157) target = $region12
      $region11: #{tpu_custom_call.1} parent=5 // pred_region
        %s161 = ssub.s32 %s18, 1
      $region12: #{tpu_custom_call.1} parent=5 // pred_fallthru
        _
      %p162 = scmp.lt.s32.totalorder %s18, 8
      // Predicated region
      $region13: #{tpu_custom_call.1} parent=5 // pred_check
        %p163 = pneg %p162
      $region14: #{tpu_custom_call.1} parent=5 // pred_check_branch
        %165 = sbr.rel (%p163) target = $region16
      $region15: #{tpu_custom_call.1} parent=5 // pred_region
        // Predicated region
        $region17: #{tpu_custom_call.1} parent=15 // pred_check
          %p166 = pneg %p59
        $region18: #{tpu_custom_call.1} parent=15 // pred_check_branch
          %168 = sbr.rel (%p166) target = $region20
        $region19: #{tpu_custom_call.1} parent=15 // pred_region
          %s169 = sand.u32 %s49, 1
          %s170 = scalar_lea.sflag [#allocation4], %s169
          %s171 = sand.u32 %s49, 1
          %s172 = smul.addr %s171, 8
          %s173 = scalar_lea.vmem [#allocation3], %s172
          %175 = vsyncadd %s170, 0
          %s176 = smul.addr %s25, 2
          %s177 = sadd.s32 %s27, %s176
          %s178 = smul.addr %s177, 8
          %s179 = scalar_lea.hbm %s0, %s178
          %s181 = sshll.u32 %s179, 4
          %s182 = int_to_ptr.hbm [resolvable:$true] %s181
          %s183 = sshll.u32 %s173, 4
          %s184 = int_to_ptr.vmem [resolvable:$true] %s183
          %186 = dma.hbm_to_vmem [thread:$0]  %s182, 128, %s184, %s170
        $region20: #{tpu_custom_call.1} parent=15 // pred_fallthru
          _
        // Predicated region
        $region21: #{tpu_custom_call.1} parent=15 // pred_check
          %p187 = pneg %p87
        $region22: #{tpu_custom_call.1} parent=15 // pred_check_branch
          %189 = sbr.rel (%p187) target = $region24
        $region23: #{tpu_custom_call.1} parent=15 // pred_region
          %s190 = sand.u32 %s18, 1
          %s191 = scalar_lea.sflag [#allocation7], %s190
          %s192 = sand.u32 %s77, 1
          %s193 = smul.addr %s192, 128
          %s194 = scalar_lea.vmem [#allocation6], %s193
          %s195 = smul.u32 16, %s26
          %197 = vsyncadd %s191, 0
          %s198 = smul.addr %s195, 2
          %s199 = sadd.s32 %s27, %s198
          %s200 = smul.addr %s199, 8
          %s201 = scalar_lea.hbm %s1, %s200
          %s202 = sshll.u32 %s201, 4
          %s203 = int_to_ptr.hbm [resolvable:$true] %s202
          %s204 = sshll.u32 %s194, 4
          %s205 = int_to_ptr.vmem [resolvable:$true] %s204
          %210 = dma.hbm_to_vmem [thread:$0]  %s203, 2048, %s205, %s191, 256, 128, 8
        $region24: #{tpu_custom_call.1} parent=15 // pred_fallthru
          _
        // Predicated region
        $region25: #{tpu_custom_call.1} parent=15 // pred_check
          %p211 = pneg %p113
        $region26: #{tpu_custom_call.1} parent=15 // pred_check_branch
          %213 = sbr.rel (%p211) target = $region28
        $region27: #{tpu_custom_call.1} parent=15 // pred_region
          %s214 = sand.u32 %s18, 1
          %s215 = scalar_lea.sflag [#allocation7], %s214
          %s216 = sand.u32 %s103, 1
          %s217 = scalar_lea.vmem [#allocation8], %s216
          %219 = vsyncadd %s215, 0
          %s220 = scalar_lea.hbm %s2, %s26
          %s222 = sshll.u32 %s220, 4
          %s223 = int_to_ptr.hbm [resolvable:$true] %s222
          %s224 = sshll.u32 %s217, 4
          %s225 = int_to_ptr.vmem [resolvable:$true] %s224
          %227 = dma.hbm_to_vmem [thread:$0]  %s223, 16, %s225, %s215
        $region28: #{tpu_custom_call.1} parent=15 // pred_fallthru
          _
      $region16: #{tpu_custom_call.1} parent=5 // pred_fallthru
        _
      %p228 = scmp.le.s32.totalorder 1, %s18
      %p229 = scmp.lt.s32.totalorder %s18, 9
      %p230 = pnand %p228, %p229
      %p231 = pneg %p230
      // Predicated region
      $region29: #{tpu_custom_call.1} parent=5 // pred_check
        _
      $region30: #{tpu_custom_call.1} parent=5 // pred_check_branch
        %233 = sbr.rel (%p230) target = $region32
      $region31: #{tpu_custom_call.1} parent=5 // pred_region
        %s234 = ssub.s32 %s18, 1
        %s235 = sand.u32 %s52, 1
        %s236 = scalar_lea.sflag [#allocation4], %s235
        %s237 = sand.u32 %s52, 1
        %s238 = smul.addr %s237, 8
        %s239 = scalar_lea.vmem [#allocation3], %s238
        // Predicated region
        $region33: #{tpu_custom_call.1} parent=31 // pred_check
          %p240 = pneg %p65
        $region34: #{tpu_custom_call.1} parent=31 // pred_check_branch
          %242 = sbr.rel (%p240) target = $region36
        $region35: #{tpu_custom_call.1} parent=31 // pred_region
          %244 = dma.done %s236, 128
        $region36: #{tpu_custom_call.1} parent=31 // pred_fallthru
          _
        %s245 = sand.u32 %s23, 1
        %s246 = scalar_lea.sflag [#allocation7], %s245
        %s247 = sand.u32 %s80, 1
        %s248 = smul.addr %s247, 128
        %s249 = scalar_lea.vmem [#allocation6], %s248
        // Predicated region
        $region37: #{tpu_custom_call.1} parent=31 // pred_check
          %p250 = pneg %p93
        $region38: #{tpu_custom_call.1} parent=31 // pred_check_branch
          %252 = sbr.rel (%p250) target = $region40
        $region39: #{tpu_custom_call.1} parent=31 // pred_region
          %254 = dma.done %s246, 2048
        $region40: #{tpu_custom_call.1} parent=31 // pred_fallthru
          _
        %s255 = sand.u32 %s23, 1
        %s256 = scalar_lea.sflag [#allocation7], %s255
        %s257 = sand.u32 %s106, 1
        %s258 = scalar_lea.vmem [#allocation8], %s257
        // Predicated region
        $region41: #{tpu_custom_call.1} parent=31 // pred_check
          %p259 = pneg %p119
        $region42: #{tpu_custom_call.1} parent=31 // pred_check_branch
          %261 = sbr.rel (%p259) target = $region44
        $region43: #{tpu_custom_call.1} parent=31 // pred_region
          %263 = dma.done %s256, 16
        $region44: #{tpu_custom_call.1} parent=31 // pred_fallthru
          _
        %s264 = sand.u32 %s52, 1
        %s265 = scalar_lea.sflag [#allocation4], %s264
        %s266 = sand.u32 %s52, 1
        %s267 = smul.addr %s266, 8
        %s268 = scalar_lea.vmem [#allocation3], %s267
        %p269 = pneg %p65
        %p270 = pneg %p62
        %s271 = sand.u32 %s23, 1
        %s272 = scalar_lea.sflag [#allocation7], %s271
        %s273 = sand.u32 %s80, 1
        %s274 = smul.addr %s273, 128
        %s275 = scalar_lea.vmem [#allocation6], %s274
        %p276 = pneg %p93
        %p277 = pneg %p90
        %s278 = sand.u32 %s23, 1
        %s279 = scalar_lea.sflag [#allocation7], %s278
        %s280 = sand.u32 %s106, 1
        %s281 = scalar_lea.vmem [#allocation8], %s280
        %p282 = pneg %p119
        %p283 = pneg %p116
        %p284 = pneg %p147
        %p285 = pneg %p144
        %s286 = sand.u32 %s134, 1
        %s287 = scalar_lea.sflag [#allocation5], %s286
        %s288 = sand.u32 %s134, 1
        %s289 = smul.addr %s288, 8
        %s290 = scalar_lea.vmem [#allocation9], %s289
        %s291 = smul.u32 16, %s29
        %p292 = scmp.eq.s32.totalorder %s30, 0
        // Predicated region
        $region45: #{tpu_custom_call.1} parent=31 // pred_check
          %p293 = pneg %p292
        $region46: #{tpu_custom_call.1} parent=31 // pred_check_branch
          %295 = sbr.rel (%p293) target = $region48
        $region47: #{tpu_custom_call.1} parent=31 // pred_region
          %296 = vst [vmem:[#allocation2] sm:$0xff] 0.0
        $region48: #{tpu_custom_call.1} parent=31 // pred_fallthru
          _
        %v297 = vld [vmem:[#allocation2] sm:$0xff]
        %v298 = vld [vmem:[%s239] sm:$0xff]
        %v299 = vld [vmem:[%s249] sm:$0xff]
        %v300 = vld [vmem:[%s249 + $0x8] sm:$0xff]
        %v301 = vld [vmem:[%s249 + $0x10] sm:$0xff]
        %v302 = vld [vmem:[%s249 + $0x18] sm:$0xff]
        %v303 = vld [vmem:[%s249 + $0x20] sm:$0xff]
        %v304 = vld [vmem:[%s249 + $0x28] sm:$0xff]
        %v305 = vld [vmem:[%s249 + $0x30] sm:$0xff]
        %v306 = vld [vmem:[%s249 + $0x38] sm:$0xff]
        %v307 = vld [vmem:[%s249 + $0x40] sm:$0xff]
        %v308 = vld [vmem:[%s249 + $0x48] sm:$0xff]
        %v309 = vld [vmem:[%s249 + $0x50] sm:$0xff]
        %v310 = vld [vmem:[%s249 + $0x58] sm:$0xff]
        %v311 = vld [vmem:[%s249 + $0x60] sm:$0xff]
        %v312 = vld [vmem:[%s249 + $0x68] sm:$0xff]
        %v313 = vld [vmem:[%s249 + $0x70] sm:$0xff]
        %v314 = vld [vmem:[%s249 + $0x78] sm:$0xff]
        %315 = vmatpush.xpose.msra.mxu0 %v314
        %316 = vmatpush.xpose.msra.mxu0 %v313
        %317 = vmatpush.xpose.msra.mxu0 %v312
        %318 = vmatpush.xpose.msra.mxu0 %v311
        %319 = vmatpush.xpose.msra.mxu0 %v310
        %320 = vmatpush.xpose.msra.mxu0 %v309
        %321 = vmatpush.xpose.msra.mxu0 %v308
        %322 = vmatpush.xpose.msra.mxu0 %v307
        %323 = vmatpush.xpose.msra.mxu0 %v306
        %324 = vmatpush.xpose.msra.mxu0 %v305
        %325 = vmatpush.xpose.msra.mxu0 %v304
        %326 = vmatpush.xpose.msra.mxu0 %v303
        %327 = vmatpush.xpose.msra.mxu0 %v302
        %328 = vmatpush.xpose.msra.mxu0 %v301
        %329 = vmatpush.xpose.msra.mxu0 %v300
        %330 = vmatpush.xpose.msra.mxu0 %v299
        %331 = vmatmul.f32.gmra.mxu0 %v298
        %v332 = vpop.f32.mrf.mxu0
        %v333 = vadd.f32 0.0, %v332
        %334 = vdwg.mxu0
        %v335 = vadd.f32 %v297, %v333
        %336 = vst [vmem:[#allocation2] sm:$0xff] %v335
        %p337 = scmp.eq.s32.totalorder %s30, 1
        // Predicated region
        $region49: #{tpu_custom_call.1} parent=31 // pred_check
          %p338 = pneg %p337
        $region50: #{tpu_custom_call.1} parent=31 // pred_check_branch
          %340 = sbr.rel (%p338) target = $region52
        $region51: #{tpu_custom_call.1} parent=31 // pred_region
          %v341 = vld [vmem:[#allocation2] sm:$0xff]
          %v342 = vld [vmem:[%s258] sm:$0x1]
          %v344 = vperm.slane %v342, 0
          %v346 = vadd.f32 %v341, %v344
          %vm347 = vcmp.ge.f32.partialorder %v346, 0.0
          %v348 = vmul.f32 %v346, 0.01
          %v349 = vsel %vm347, %v346, %v348
          %350 = vst [vmem:[%s290] sm:$0xff] %v349
        $region52: #{tpu_custom_call.1} parent=31 // pred_fallthru
          _
        %s351 = sand.u32 %s134, 1
        %s352 = scalar_lea.sflag [#allocation5], %s351
        %s353 = sand.u32 %s134, 1
        %s354 = smul.addr %s353, 8
        %s355 = scalar_lea.vmem [#allocation9], %s354
        // Predicated region
        $region53: #{tpu_custom_call.1} parent=31 // pred_check
          %p356 = pneg %p144
        $region54: #{tpu_custom_call.1} parent=31 // pred_check_branch
          %358 = sbr.rel (%p356) target = $region56
        $region55: #{tpu_custom_call.1} parent=31 // pred_region
          %360 = vsyncadd %s352, 0
          %s361 = smul.addr %s28, 2
          %s362 = sadd.s32 %s29, %s361
          %s363 = smul.addr %s362, 8
          %s364 = scalar_lea.hbm %s3, %s363
          %s366 = sshll.u32 %s355, 4
          %s367 = int_to_ptr.vmem [resolvable:$true] %s366
          %s368 = sshll.u32 %s364, 4
          %s369 = int_to_ptr.hbm [resolvable:$true] %s368
          %371 = dma.vmem_to_hbm [thread:$0]  %s367, 128, %s369, %s352
        $region56: #{tpu_custom_call.1} parent=31 // pred_fallthru
          _
      $region32: #{tpu_custom_call.1} parent=5 // pred_fallthru
        _
      %p372 = scmp.le.s32.totalorder 2, %s18
      // Predicated region
      $region57: #{tpu_custom_call.1} parent=5 // pred_check
        %p373 = pneg %p372
      $region58: #{tpu_custom_call.1} parent=5 // pred_check_branch
        %375 = sbr.rel (%p373) target = $region60
      $region59: #{tpu_custom_call.1} parent=5 // pred_region
        %s376 = ssub.s32 %s18, 2
        // Predicated region
        $region61: #{tpu_custom_call.1} parent=59 // pred_check
          %p377 = pneg %p150
        $region62: #{tpu_custom_call.1} parent=59 // pred_check_branch
          %379 = sbr.rel (%p377) target = $region64
        $region63: #{tpu_custom_call.1} parent=59 // pred_region
          %s380 = sand.u32 %s135, 1
          %s381 = scalar_lea.sflag [#allocation5], %s380
          %s382 = sand.u32 %s135, 1
          %s383 = smul.addr %s382, 8
          %s384 = scalar_lea.vmem [#allocation9], %s383
          %386 = dma.done %s381, 128
        $region64: #{tpu_custom_call.1} parent=59 // pred_fallthru
          _
      $region60: #{tpu_custom_call.1} parent=5 // pred_fallthru
        _
    $region6: #{tpu_custom_call.1} parent=1 // loop_footer
      %s22 = sadd.s32 1, %s18
    $region7: #{tpu_custom_call.1} parent=1 // loop_footer_branch
      %17 = sbr.rel target = $region3
    $region8: #{tpu_custom_call.1} parent=1 // loop_exit
      _
    %387 = vsyncpa [#allocation4], 1
    %s388 = scalar_lea.sflag [#allocation4], 1
    %389 = vsyncpa %s388, 1
    %390 = vsyncpa [#allocation7], 1
    %s391 = scalar_lea.sflag [#allocation7], 1
    %392 = vsyncpa %s391, 1
    %393 = vsyncpa [#allocation5], 1
    %s394 = scalar_lea.sflag [#allocation5], 1
    %395 = vsyncpa %s394, 1

</llo_original>
